<compile_context>
chip_gen: v6e
topology: v6e:2x2x1
jax: 0.10.0
libtpu: 0.0.40
codegen_flags: <defaults>
</compile_context>

<pallas_src>
import functools

import jax
import jax.numpy as jnp
import numpy as np
from jax.experimental import pallas as pl
from jax.experimental.pallas import tpu as pltpu

EPS = 1e-5
LANE = 128


def _round_up(v, m):
    return ((v + m - 1) // m) * m


def _pick_row_tile(nrows):
    """Largest tile <= 1024 that divides nrows; None means the caller should pad."""
    for t in (1024, 512, 256, 128, 64, 32, 16, 8):
        if nrows % t == 0:
            return t
    return None


def _pick_h_tile(H, W, max_rows=1024):
    """Largest divisor of H whose row-tile (TH*W) stays within max_rows matmul rows."""
    best = 1
    for th in range(1, H + 1):
        if H % th == 0 and th * W <= max_rows:
            best = th
    return best


def _params(dims, need_bytes):
    # Derive the scoped-VMEM request from the actual (double-buffered) working set,
    # clamped to stay safe on v7x's 64 MiB physical VMEM.
    limit = int(min(max(2 * need_bytes, 32 * 1024 * 1024), 44 * 1024 * 1024))
    return pltpu.CompilerParams(dimension_semantics=dims, vmem_limit_bytes=limit)


# --------------------------------------------------------------------------- kernels
def _stats_kernel(x_ref, s_ref, ss_ref):
    """Per-(folded-)channel partial sum / sum-of-squares of one row tile."""
    x = x_ref[...].astype(jnp.float32)                        # (TR, Cfold)
    s_ref[0] = jnp.sum(x, axis=0, keepdims=True)              # direct stores, no concat
    ss_ref[0] = jnp.sum(x * x, axis=0, keepdims=True)


def _bn1_conv1_kernel(x_ref, sc_ref, sh_ref, w_ref, y_ref, s_ref, ss_ref,
                      *, TR, nvalid, need_mask):
    """y1 = relu(bn1(x)) @ w1 for one row tile (bf16 store) + BN2 partial statistics."""
    x = x_ref[...].astype(jnp.float32)                        # (TR, C)
    xr = jnp.maximum(x * sc_ref[...] + sh_ref[...], 0.0)      # BN1 + ReLU (folded)
    if need_mask:                                             # zero padded rows -> stats stay exact
        row = pl.program_id(0) * TR + jax.lax.broadcasted_iota(jnp.int32, (TR, 1), 0)
        xr = jnp.where(row < nvalid, xr, 0.0)
    y = jnp.dot(xr.astype(jnp.bfloat16), w_ref[...],          # 1x1 conv on MXU (bf16 in, f32 acc)
                preferred_element_type=jnp.float32)           # (TR, interp)
    y_ref[...] = y.astype(y_ref.dtype)                        # bf16 HBM intermediate
    s_ref[0] = jnp.sum(y, axis=0, keepdims=True)              # BN2 stats from the f32 accumulator
    ss_ref[0] = jnp.sum(y * y, axis=0, keepdims=True)


def _bn2_conv3x3_kernel(yc_ref, yu_ref, yd_ref, sc_ref, sh_ref, w_ref, out_ref,
                        *, TH, W, HT):
    """relu(bn2(y1)) then 3x3 SAME conv via one im2col matmul over a row tile + halo rows."""
    t = pl.program_id(1)
    sc = sc_ref[...]                                          # (1, interp)
    sh = sh_ref[...]
    interp = sc.shape[-1]

    def bn_relu(a):
        return jnp.maximum(a.astype(jnp.float32) * sc + sh, 0.0)

    yc = bn_relu(yc_ref[0].reshape(TH * W, interp))           # center rows of the tile
    yu = bn_relu(yu_ref[0].reshape(W, interp))                # halo row above
    yd = bn_relu(yd_ref[0].reshape(W, interp))                # halo row below
    # zero the halo rows that fall outside the image (SAME padding is zero *post*-activation)
    yu = yu * (t > 0).astype(jnp.float32)
    yd = yd * (t < HT - 1).astype(jnp.float32)
    yf = jnp.concatenate([yu, yc, yd], axis=0)                # ((TH+2)*W, interp)

    rows = (TH + 2) * W
    col = jax.lax.broadcasted_iota(jnp.int32, (rows, 1), 0) % W
    # only two unaligned rolls + two masks (instead of 8 rolls / 9 selects)
    y_m1 = jnp.where(col != 0, pltpu.roll(yf, shift=1, axis=0), 0.0)          # value from column w-1
    y_p1 = jnp.where(col != W - 1, pltpu.roll(yf, shift=rows - 1, axis=0), 0.0)  # value from column w+1

    taps = []
    for dyi in range(3):                                      # dy = -1, 0, +1  -> row slice of window
        base = dyi * W
        for s in (y_m1, yf, y_p1):                            # dx = -1, 0, +1  (matches weight layout)
            taps.append(s[base:base + TH * W, :].astype(jnp.bfloat16))
    patch = jnp.concatenate(taps, axis=-1)                    # (TH*W, 9*interp) im2col patch
    out = jnp.dot(patch, w_ref[...], preferred_element_type=jnp.float32)      # single deep-K matmul
    out_ref[0] = out.reshape(TH, W, -1).astype(out_ref.dtype)


# --------------------------------------------------------------------------- wrapper
def bottleneck_forward(x_nchw, params):
    g1, b1, w1, g2, b2, w2 = params
    N, C, H, W = x_nchw.shape
    inter = w1.shape[1]
    growth = w2.shape[-1]
    interp = _round_up(inter, LANE)
    growthp = _round_up(growth, LANE)
    HW = H * W
    NHW = N * HW

    # ---- layout prep (plain XLA, outside the kernels); keep the input dtype ----
    x_nhwc = jnp.transpose(x_nchw, (0, 2, 3, 1))                      # NCHW -> NHWC
    x2d = x_nhwc.reshape(NHW, C)

    # pad channel dims of the weights / BN params to full 128-lane tiles (zeros are inert)
    w1p = jnp.zeros((C, interp), jnp.bfloat16).at[:, :inter].set(w1.astype(jnp.bfloat16))
    w2slab = (jnp.zeros((9, interp, growthp), jnp.bfloat16)
              .at[:, :inter, :growth].set(w2.reshape(9, inter, growth).astype(jnp.bfloat16))
              .reshape(9 * interp, growthp))
    g2p = jnp.zeros((interp,), jnp.float32).at[:inter].set(g2[0])
    b2p = jnp.zeros((interp,), jnp.float32).at[:inter].set(b2[0])

    # ---- phase 1: BN1 batch statistics (lane-folded, tiled partials + tiny jnp reduce) ----
    kfold = 1
    if C < LANE:
        for k in range(LANE // C, 0, -1):
            if NHW % k == 0:
                kfold = k
                break
    rows1 = NHW // kfold
    cols1 = kfold * C
    x_stats = x2d.reshape(rows1, cols1)                               # free reshape (row-major)
    TR1 = _pick_row_tile(rows1)
    if TR1 is None:                                                   # pad with zeros (inert for sums)
        TR1 = min(256, _round_up(rows1, 8))
        rows1p = _round_up(rows1, TR1)
        x_stats = jnp.zeros((rows1p, cols1), x_stats.dtype).at[:rows1].set(x_stats)
    else:
        rows1p = rows1
    G1 = rows1p // TR1

    vmem1 = 3 * TR1 * cols1 * 4 + 8 * cols1 * 4
    s1, ss1 = pl.pallas_call(
        _stats_kernel,
        grid=(G1,),
        in_specs=[pl.BlockSpec((TR1, cols1), lambda i: (i, 0))],
        out_specs=(pl.BlockSpec((1, 1, cols1), lambda i: (i, 0, 0)),
                   pl.BlockSpec((1, 1, cols1), lambda i: (i, 0, 0))),
        out_shape=(jax.ShapeDtypeStruct((G1, 1, cols1), jnp.float32),
                   jax.ShapeDtypeStruct((G1, 1, cols1), jnp.float32)),
        compiler_params=_params(("parallel",), vmem1),
    )(x_stats)
    sum1 = jnp.sum(s1, axis=(0, 1)).reshape(kfold, C).sum(axis=0)
    sumsq1 = jnp.sum(ss1, axis=(0, 1)).reshape(kfold, C).sum(axis=0)
    # TODO(synk): single-pass E[x^2]-E[x]^2 can cancel for very large NHW / large means;
    # fine at these sizes, use Welford-style partials for production resolutions.
    mean1 = sum1 / NHW
    var1 = jnp.maximum(sumsq1 / NHW - mean1 * mean1, 0.0)
    inv1 = jax.lax.rsqrt(var1 + EPS)
    scale1 = (g1[0] * inv1).reshape(1, C)
    shift1 = (b1[0] - mean1 * g1[0] * inv1).reshape(1, C)

    # ---- phase 2: BN1 + ReLU + 1x1 conv (bf16 y1), fused with BN2 partial statistics ----
    TR2 = _pick_row_tile(NHW)
    if TR2 is None:
        TR2 = min(256, _round_up(NHW, 8))
        NHW2 = _round_up(NHW, TR2)
        x2 = jnp.zeros((NHW2, C), x2d.dtype).at[:NHW].set(x2d)
        need_mask = True
    else:
        NHW2 = NHW
        x2 = x2d
        need_mask = False
    G2 = NHW2 // TR2

    kern2 = functools.partial(_bn1_conv1_kernel, TR=TR2, nvalid=NHW, need_mask=need_mask)
    vmem2 = (2 * TR2 * C * 4 + 2 * TR2 * interp * 2 + C * interp * 2
             + 2 * TR2 * interp * 4 + 8 * interp * 4)
    y1, s2, ss2 = pl.pallas_call(
        kern2,
        grid=(G2,),
        in_specs=[pl.BlockSpec((TR2, C), lambda i: (i, 0)),
                  pl.BlockSpec((1, C), lambda i: (0, 0)),
                  pl.BlockSpec((1, C), lambda i: (0, 0)),
                  pl.BlockSpec((C, interp), lambda i: (0, 0))],
        out_specs=(pl.BlockSpec((TR2, interp), lambda i: (i, 0)),
                   pl.BlockSpec((1, 1, interp), lambda i: (i, 0, 0)),
                   pl.BlockSpec((1, 1, interp), lambda i: (i, 0, 0))),
        out_shape=(jax.ShapeDtypeStruct((NHW2, interp), jnp.bfloat16),
                   jax.ShapeDtypeStruct((G2, 1, interp), jnp.float32),
                   jax.ShapeDtypeStruct((G2, 1, interp), jnp.float32)),
        compiler_params=_params(("parallel",), vmem2),
    )(x2, scale1, shift1, w1p)
    sum2 = jnp.sum(s2, axis=(0, 1))
    sumsq2 = jnp.sum(ss2, axis=(0, 1))
    mean2 = sum2 / NHW
    var2 = jnp.maximum(sumsq2 / NHW - mean2 * mean2, 0.0)
    inv2 = jax.lax.rsqrt(var2 + EPS)
    scale2 = (g2p * inv2).reshape(1, interp)
    shift2 = (b2p - mean2 * g2p * inv2).reshape(1, interp)

    # ---- phase 3: BN2 + ReLU + 3x3 conv, row-tiled per image with halo rows ----
    y1_img = y1[:NHW].reshape(N, H, W, interp)                        # no-op when NHW2 == NHW
    TH = _pick_h_tile(H, W)
    HT = H // TH
    kern3 = functools.partial(_bn2_conv3x3_kernel, TH=TH, W=W, HT=HT)
    vmem3 = (2 * TH * W * interp * 2 + 4 * W * interp * 2
             + 9 * interp * growthp * 2 + 2 * TH * W * growthp * 4
             + 4 * (TH + 2) * W * interp * 4 + TH * W * 9 * interp * 2)
    y2 = pl.pallas_call(
        kern3,
        grid=(N, HT),
        in_specs=[
            pl.BlockSpec((1, TH, W, interp), lambda n, t: (n, t, 0, 0)),
            pl.BlockSpec((1, 1, W, interp),
                         lambda n, t: (n, jnp.maximum(t * TH - 1, 0), 0, 0)),   # halo row above
            pl.BlockSpec((1, 1, W, interp),
                         lambda n, t: (n, jnp.minimum(t * TH + TH, H - 1), 0, 0)),  # halo row below
            pl.BlockSpec((1, interp), lambda n, t: (0, 0)),
            pl.BlockSpec((1, interp), lambda n, t: (0, 0)),
            pl.BlockSpec((9 * interp, growthp), lambda n, t: (0, 0)),
        ],
        out_specs=pl.BlockSpec((1, TH, W, growthp), lambda n, t: (n, t, 0, 0)),
        out_shape=jax.ShapeDtypeStruct((N, H, W, growthp), jnp.float32),
        compiler_params=_params(("parallel", "parallel"), vmem3),
    )(y1_img, y1_img, y1_img, scale2, shift2, w2slab)

    # ---- identity concat + back to NCHW (pure layout, outside the kernels) ----
    y2 = y2[:, :, :, :growth].astype(x_nchw.dtype)
    out_nhwc = jnp.concatenate([x_nhwc.astype(x_nchw.dtype), y2], axis=-1)
    return jnp.transpose(out_nhwc, (0, 3, 1, 2))                      # NHWC -> NCHW


# --------------------------------------------------------------------------- params / reference
def init_params(key, nchannels, growthrate):
    inter = 4 * growthrate
    k1, k2, k3, k4, k5, k6 = jax.random.split(key, 6)
    g1 = 1.0 + 0.1 * jax.random.normal(k1, (1, nchannels), jnp.float32)
    b1 = 0.1 * jax.random.normal(k2, (1, nchannels), jnp.float32)
    w1 = 0.3 * jax.random.normal(k3, (nchannels, inter), jnp.float32)          # 1x1 conv (Cin, Cout)
    g2 = 1.0 + 0.1 * jax.random.normal(k4, (1, inter), jnp.float32)
    b2 = 0.1 * jax.random.normal(k5, (1, inter), jnp.float32)
    w2 = 0.2 * jax.random.normal(k6, (3, 3, inter, growthrate), jnp.float32)   # HWIO
    return g1, b1, w1, g2, b2, w2


def reference(x_nchw, params):
    """Plain-JAX (f32) reference of the same forward pass."""
    g1, b1, w1, g2, b2, w2 = params
    x = jnp.transpose(x_nchw, (0, 2, 3, 1)).astype(jnp.float32)
    m1 = x.mean(axis=(0, 1, 2))
    v1 = ((x - m1) ** 2).mean(axis=(0, 1, 2))
    xr = jnp.maximum((x - m1) / jnp.sqrt(v1 + EPS) * g1[0] + b1[0], 0.0)
    y1 = jnp.einsum('nhwc,ck->nhwk', xr, w1)
    m2 = y1.mean(axis=(0, 1, 2))
    v2 = ((y1 - m2) ** 2).mean(axis=(0, 1, 2))
    yr = jnp.maximum((y1 - m2) / jnp.sqrt(v2 + EPS) * g2[0] + b2[0], 0.0)
    y2 = jax.lax.conv_general_dilated(yr, w2, window_strides=(1, 1), padding='SAME',
                                      dimension_numbers=('NHWC', 'HWIO', 'NHWC'))
    out = jnp.concatenate([x, y2], axis=-1)
    return jnp.transpose(out, (0, 3, 1, 2))


if __name__ == "__main__":
    nchannels, growthrate = 4, 4
    N, H, W = 2, 16, 16

    key = jax.random.PRNGKey(0)
    kx, kp = jax.random.split(key)
    x = jax.random.normal(kx, (N, nchannels, H, W), jnp.float32)
    params = init_params(kp, nchannels, growthrate)

    out = jax.block_until_ready(bottleneck_forward(x, params))
    assert out.shape == (N, nchannels + growthrate, H, W), out.shape

    ref = jax.block_until_ready(reference(x, params))
    # Kernel uses bf16 MXU inputs and a bf16 y1 HBM intermediate (f32 accumulation / stats),
    # so allow a small absolute slack vs the f32 reference.
    np.testing.assert_allclose(np.asarray(out), np.asarray(ref), rtol=5e-2, atol=1e-1)

    print("KERNEL_OK")
</pallas_src>

<mosaic_0001>
module attributes {stable_mosaic.version = 11 : i64} {
  func.func @_stats_kernel(%arg0: i32, %arg1: memref<16x128xf32, #tpu.memory_space<vmem>>, %arg2: memref<1x1x128xf32, #tpu.memory_space<vmem>>, %arg3: memref<1x1x128xf32, #tpu.memory_space<vmem>>) attributes {dimension_semantics = [#tpu.dimension_semantics<parallel>], iteration_bounds = array<i64: 1>, scalar_prefetch = 0 : i64, scratch_operands = 0 : i64, tpu.core_type = #tpu.core_type<tc>, window_params = [{transform_indices = @transform_0, window_bounds = array<i64: 16, 128>}, {transform_indices = @transform_1, window_bounds = array<i64: 1, 1, 128>}, {transform_indices = @transform_2, window_bounds = array<i64: 1, 1, 128>}]} {
    %c0 = arith.constant 0 : index
    %c0_0 = arith.constant 0 : index
    %0 = vector.load %arg1[%c0, %c0_0] : memref<16x128xf32, #tpu.memory_space<vmem>>, vector<16x128xf32>
    %cst = arith.constant dense<0.000000e+00> : vector<128xf32>
    %1 = vector.multi_reduction <add>, %0, %cst [0] : vector<16x128xf32> to vector<128xf32>
    %2 = vector.shape_cast %1 : vector<128xf32> to vector<1x128xf32>
    %c0_1 = arith.constant 0 : index
    %c0_2 = arith.constant 0 : index
    %c0_3 = arith.constant 0 : index
    %3 = vector.load %arg2[%c0_1, %c0_2, %c0_3] : memref<1x1x128xf32, #tpu.memory_space<vmem>>, vector<1x1x128xf32>
    %4 = vector.shape_cast %3 : vector<1x1x128xf32> to vector<1x128xf32>
    %5 = vector.shape_cast %2 : vector<1x128xf32> to vector<1x1x128xf32>
    tpu.vector_store %arg2[%c0_1, %c0_2, %c0_3], %5 {strides = array<i32>} : memref<1x1x128xf32, #tpu.memory_space<vmem>>, vector<1x1x128xf32>,
    %6 = arith.mulf %0, %0 : vector<16x128xf32>
    %cst_4 = arith.constant dense<0.000000e+00> : vector<128xf32>
    %7 = vector.multi_reduction <add>, %6, %cst_4 [0] : vector<16x128xf32> to vector<128xf32>
    %8 = vector.shape_cast %7 : vector<128xf32> to vector<1x128xf32>
    %c0_5 = arith.constant 0 : index
    %c0_6 = arith.constant 0 : index
    %c0_7 = arith.constant 0 : index
    %9 = vector.load %arg3[%c0_5, %c0_6, %c0_7] : memref<1x1x128xf32, #tpu.memory_space<vmem>>, vector<1x1x128xf32>
    %10 = vector.shape_cast %9 : vector<1x1x128xf32> to vector<1x128xf32>
    %11 = vector.shape_cast %8 : vector<1x128xf32> to vector<1x1x128xf32>
    tpu.vector_store %arg3[%c0_5, %c0_6, %c0_7], %11 {strides = array<i32>} : memref<1x1x128xf32, #tpu.memory_space<vmem>>, vector<1x1x128xf32>,
    return
  }
  func.func @transform_0(%arg0: i32) -> (i32, i32) {
    %c0_i32 = arith.constant 0 : i32
    %c0_i32_0 = arith.constant 0 : i32
    return %arg0, %c0_i32 : i32, i32
  }
  func.func @transform_1(%arg0: i32) -> (i32, i32, i32) {
    %c0_i32 = arith.constant 0 : i32
    %c0_i32_0 = arith.constant 0 : i32
    %c0_i32_1 = arith.constant 0 : i32
    return %arg0, %c0_i32, %c0_i32_0 : i32, i32, i32
  }
  func.func @transform_2(%arg0: i32) -> (i32, i32, i32) {
    %c0_i32 = arith.constant 0 : i32
    %c0_i32_0 = arith.constant 0 : i32
    %c0_i32_1 = arith.constant 0 : i32
    return %arg0, %c0_i32, %c0_i32_0 : i32, i32, i32
  }
}

</mosaic_0001>

<llo_original>
// kernel: tpu_custom_call.1
$region0: #{tpu_custom_call.1}
  #allocation0 [shape = 'u32[]', space=smem, size = 0x4, offset = 0x4, fixed_abs, tag = 'smem constant byte address 0x4 - core index']
  #allocation1 [shape = 'u32[144,128]{1,0:T(1,128)}', space=vmem, size = 0x12000, scoped, tag = 'internal scratch']
  %s0 = inlined_call_operand.hbm [shape: f32[16,128], index: 0, kind: input, shape index: {}]
  %s1 = inlined_call_operand.hbm [shape: f32[1,1,128], index: 1, kind: output, shape index: {0}]
  %s2 = inlined_call_operand.hbm [shape: f32[1,1,128], index: 2, kind: output, shape index: {1}]
  %3 = xla_tuple %s1, %s2
  %s4 = sld [smem:[#allocation0]]
  $region26: #{tpu_custom_call.1} parent=0
    _
  %s6 = ssub.s32 1, %s4
  %s7 = scalar_select 0, %s6, %s4
  $region1: #{tpu_custom_call.1} parent=0
    #allocation2 [shape = 'u8[8192]{0}', space=vmem, size = 0x2000, scoped, tag = 'input window, operand 0, single buffered']
    #allocation3 [shape = 's32[1]{0}', space=sflag, size = 0x4, scoped, tag = 'scoped memory for tpu_custom_call.1']
    #allocation4 [shape = 's32[1]{0}', space=sflag, size = 0x4, scoped, tag = 'scoped memory for tpu_custom_call.1']
    #allocation5 [shape = 'u8[512]{0}', space=vmem, size = 0x400, scoped, tag = 'output window, operand 0, single buffered']
    #allocation6 [shape = 'u8[512]{0}', space=vmem, size = 0x400, scoped, tag = 'output window, operand 1, single buffered']
    #allocation7 [shape = 's32[1]{0}', space=sflag, size = 0x4, scoped, tag = 'scoped memory for tpu_custom_call.1']
    %8 = vsyncpa [#allocation3], 0
    %9 = vsyncpa [#allocation4], 0
    %10 = vsyncpa [#allocation7], 0
    // Predicated region
    $region2: #{tpu_custom_call.1} parent=1 // pred_check
      _
    $region3: #{tpu_custom_call.1} parent=1 // pred_check_branch
      %12 = sbr.rel (0) target = $region5
    $region4: #{tpu_custom_call.1} parent=1 // pred_region
      %s14 = ssub.s32 256, 256
      %15 = vsyncadd [#allocation3], %s14
      %s16 = sshll.u32 [#allocation2], 4
      %s17 = int_to_ptr.vmem [resolvable:$true] %s16
      %22 = dma.hbm_to_vmem [thread:$0]  %s0, 256, %s17, [#allocation3], 128, 128, 8
    $region5: #{tpu_custom_call.1} parent=1 // pred_fallthru
      _
    // Predicated region
    $region6: #{tpu_custom_call.1} parent=1 // pred_check
      _
    $region7: #{tpu_custom_call.1} parent=1 // pred_check_branch
      %24 = sbr.rel (0) target = $region9
    $region8: #{tpu_custom_call.1} parent=1 // pred_region
      %25 = dma.done [#allocation3], 256
    $region9: #{tpu_custom_call.1} parent=1 // pred_fallthru
      _
    %v26 = vld [vmem:[#allocation2] sm:$0xff]
    %v27 = vld [vmem:[#allocation2 + $0x8] sm:$0xff]
    %v28 = vadd.f32 %v26, %v27
    %v29 = vrot.slane %v28, 4
    %v30 = vadd.f32 %v28, %v29
    %v31 = vrot.slane %v30, 2
    %v32 = vadd.f32 %v30, %v31
    %v33 = vrot.slane %v32, 1
    %v34 = vadd.f32 %v32, %v33
    %35 = vst [vmem:[#allocation5] sm:$0x1] %v34
    %v36 = vmul.f32 %v26, %v26
    %v37 = vmul.f32 %v27, %v27
    %v38 = vadd.f32 %v36, %v37
    %v39 = vrot.slane %v38, 4
    %v40 = vadd.f32 %v38, %v39
    %v41 = vrot.slane %v40, 2
    %v42 = vadd.f32 %v40, %v41
    %v43 = vrot.slane %v42, 1
    %v44 = vadd.f32 %v42, %v43
    %45 = vst [vmem:[#allocation6] sm:$0x1] %v44
    // Predicated region
    $region10: #{tpu_custom_call.1} parent=1 // pred_check
      _
    $region11: #{tpu_custom_call.1} parent=1 // pred_check_branch
      %47 = sbr.rel (0) target = $region13
    $region12: #{tpu_custom_call.1} parent=1 // pred_region
      %s49 = ssub.s32 16, 16
      %50 = vsyncadd [#allocation4], %s49
      %s52 = sshll.u32 [#allocation5], 4
      %s53 = int_to_ptr.vmem [resolvable:$true] %s52
      %55 = dma.vmem_to_hbm [thread:$0]  %s53, 16, %s1, [#allocation4]
    $region13: #{tpu_custom_call.1} parent=1 // pred_fallthru
      _
    // Predicated region
    $region14: #{tpu_custom_call.1} parent=1 // pred_check
      _
    $region15: #{tpu_custom_call.1} parent=1 // pred_check_branch
      %57 = sbr.rel (0) target = $region17
    $region16: #{tpu_custom_call.1} parent=1 // pred_region
      %s59 = ssub.s32 16, 16
      %60 = vsyncadd [#allocation7], %s59
      %s62 = sshll.u32 [#allocation6], 4
      %s63 = int_to_ptr.vmem [resolvable:$true] %s62
      %65 = dma.vmem_to_hbm [thread:$0]  %s63, 16, %s2, [#allocation7]
    $region17: #{tpu_custom_call.1} parent=1 // pred_fallthru
      _
    // Predicated region
    $region18: #{tpu_custom_call.1} parent=1 // pred_check
      _
    $region19: #{tpu_custom_call.1} parent=1 // pred_check_branch
      %67 = sbr.rel (0) target = $region21
    $region20: #{tpu_custom_call.1} parent=1 // pred_region
      %68 = dma.done [#allocation4], 16
    $region21: #{tpu_custom_call.1} parent=1 // pred_fallthru
      _
    // Predicated region
    $region22: #{tpu_custom_call.1} parent=1 // pred_check
      _
    $region23: #{tpu_custom_call.1} parent=1 // pred_check_branch
      %70 = sbr.rel (0) target = $region25
    $region24: #{tpu_custom_call.1} parent=1 // pred_region
      %71 = dma.done [#allocation7], 16
    $region25: #{tpu_custom_call.1} parent=1 // pred_fallthru
      _
    %72 = vsyncpa [#allocation3], 1
    %73 = vsyncpa [#allocation4], 1
    %74 = vsyncpa [#allocation7], 1

</llo_original>
